<compile_context>
chip_gen: v7x
topology: tpu7x:2x2x1
jax: 0.10.0
libtpu: 0.0.40
codegen_flags: <defaults>
</compile_context>

<pallas_src>
import jax
import jax.numpy as jnp
from jax.experimental import pallas as pl
from jax.experimental.pallas import tpu as pltpu


def _round_up(v, m):
    return -(-v // m) * m


def _choose_tn(n_pad, max_tn=1024):
    """Lane-dense tile width that (a) divides N_pad exactly (zero wasted weight DMA),
    (b) prefers >= 2 tiles so the parallel grid axis shards across v7x's two
    TensorCores, and (c) stays <= max_tn (VMEM headroom under v5e's 16 MiB scoped
    default; pass max_tn=2048 on v6e with a raised vmem limit if desired)."""
    n128 = n_pad // 128
    if n128 <= 1:
        return 128
    best = 128  # always divides and always yields >= 2 tiles
    t = 2
    while t <= n128 // 2 and t * 128 <= max_tn:
        if n128 % t == 0:
            best = t * 128
        t += 1
    return best


def _linear_kernel(x_ref, w_ref, b_ref, o_ref):
    """o = x @ W_t + b for one N tile.

    x_ref: (B_pad, K)   f32          (resident across the N grid)
    w_ref: (K,     tn)  bf16 / f32   (pre-transposed; contracted directly, no XLU)
    b_ref: (1,     tn)  f32
    o_ref: (B_pad, tn)  f32
    """
    x = x_ref[...].astype(w_ref.dtype)  # cheap vreg cast -> bf16-native MXU path
    y = jnp.dot(x, w_ref[...], preferred_element_type=jnp.float32)
    o_ref[...] = (y + b_ref[...]).astype(o_ref.dtype)


def prepare_classifier_params(weight, bias, *, weight_dtype=jnp.bfloat16):
    """One-time parameter prep -- call once and reuse the result across forwards.

    weight: (N, K) f32 in PyTorch nn.Linear layout.
    bias:   (N,)   f32
    Returns:
      w_t:   (K, N_pad) weight_dtype  (padded to lane multiple of 128, transposed)
      b_row: (1, N_pad) f32

    weight_dtype=bf16 halves the dominant per-call weight HBM stream; accumulation
    in the kernel stays f32. Pass weight_dtype=jnp.float32 for bit-faithful f32 math
    (at 2x weight bytes per call).
    """
    N, K = weight.shape
    n_pad = _round_up(N, 128)
    w_p = weight if n_pad == N else jnp.pad(weight, ((0, n_pad - N), (0, 0)))
    w_t = jnp.transpose(w_p).astype(weight_dtype)          # (K, N_pad), one-time cost
    b_p = bias if n_pad == N else jnp.pad(bias, (0, n_pad - N))
    b_row = b_p.reshape(1, n_pad).astype(jnp.float32)
    return w_t, b_row


def classifier_forward(x, w_t, b_row, num_classes=None, *, max_tn=1024):
    """Pallas equivalent of Classifier.forward: fc(input_data).

    x:     (B, K)       f32
    w_t:   (K, N_pad)   prepared weight from prepare_classifier_params
    b_row: (1, N_pad)   prepared bias
    returns (B, num_classes) in x.dtype
    """
    B, K = x.shape
    K2, n_pad = w_t.shape
    assert K == K2, "x and prepared weight disagree on in_features"
    if num_classes is None:
        num_classes = n_pad

    # Sublane-align the batch (16 so the bf16-cast x tile is fully packed).
    b_pad = _round_up(B, 16)
    x_p = x if b_pad == B else jnp.pad(x, ((0, b_pad - B), (0, 0)))

    tn = _choose_tn(n_pad, max_tn=max_tn)
    grid = (n_pad // tn,)

    cost = pl.CostEstimate(
        flops=2 * b_pad * n_pad * K,
        transcendentals=0,
        bytes_accessed=(n_pad * K * w_t.dtype.itemsize   # weight stream (dominant)
                        + b_pad * K * 4                   # resident activations
                        + b_pad * n_pad * 4               # output
                        + n_pad * 4),                     # bias
    )

    out = pl.pallas_call(
        _linear_kernel,
        out_shape=jax.ShapeDtypeStruct((b_pad, n_pad), jnp.float32),
        grid_spec=pltpu.PrefetchScalarGridSpec(
            num_scalar_prefetch=0,
            grid=grid,
            in_specs=[
                pl.BlockSpec((b_pad, K), lambda j: (0, 0)),   # activations (resident)
                pl.BlockSpec((K, tn), lambda j: (0, j)),      # pre-transposed weight tile
                pl.BlockSpec((1, tn), lambda j: (0, j)),      # bias tile
            ],
            out_specs=pl.BlockSpec((b_pad, tn), lambda j: (0, j)),
        ),
        compiler_params=pltpu.CompilerParams(
            dimension_semantics=("parallel",),  # >= 2 N tiles -> shards across v7x's 2 TCs
        ),
        cost_estimate=cost,
    )(x_p, w_t, b_row)

    return out[:B, :num_classes].astype(x.dtype)


if __name__ == "__main__":
    # nn.Linear(2048, num_classes): K fixed at 2048; small batch / class count,
    # chosen so both the B-pad (10 -> 16) and N-pad (300 -> 384) paths are exercised.
    B = 10
    K = 2048
    NUM_CLASSES = 300

    key = jax.random.PRNGKey(0)
    kx, kw, kb = jax.random.split(key, 3)

    x = jax.random.normal(kx, (B, K), dtype=jnp.float32)
    weight = jax.random.normal(kw, (NUM_CLASSES, K), dtype=jnp.float32) * 0.02
    bias = jax.random.normal(kb, (NUM_CLASSES,), dtype=jnp.float32) * 0.01

    # One-time weight prep (hoisted/cached; reused across every forward call).
    w_t, b_row = jax.block_until_ready(prepare_classifier_params(weight, bias))

    out = jax.block_until_ready(
        classifier_forward(x, w_t, b_row, num_classes=NUM_CLASSES)
    )
    assert out.shape == (B, NUM_CLASSES)

    # Tight check against the exact math the kernel performs (bf16 operands,
    # f32 accumulation).
    xq = x.astype(jnp.bfloat16).astype(jnp.float32)
    wq = weight.astype(jnp.bfloat16).astype(jnp.float32)
    ref_q = xq @ wq.T + bias
    assert jnp.allclose(out, ref_q, atol=2e-3, rtol=2e-3)

    # Faithfulness to the full-precision nn.Linear forward (bf16 quantization
    # noise only; pass weight_dtype=jnp.float32 to prepare_classifier_params for
    # bit-faithful f32 math).
    ref = jnp.dot(x, weight.T, precision=jax.lax.Precision.HIGHEST) + bias
    assert jnp.allclose(out, ref, atol=3e-2, rtol=3e-2)

    print("KERNEL_OK")
</pallas_src>

<mosaic_0001>
module attributes {stable_mosaic.version = 11 : i64} {
  func.func @_linear_kernel(%arg0: i32, %arg1: memref<16x2048xf32, #tpu.memory_space<vmem>>, %arg2: memref<2048x128xbf16, #tpu.memory_space<vmem>>, %arg3: memref<1x128xf32, #tpu.memory_space<vmem>>, %arg4: memref<16x128xf32, #tpu.memory_space<vmem>>) attributes {dimension_semantics = [#tpu.dimension_semantics<parallel>], iteration_bounds = array<i64: 3>, scalar_prefetch = 0 : i64, scratch_operands = 0 : i64, tpu.core_type = #tpu.core_type<tc>, window_params = [{pipeline_mode = #tpu.pipeline_mode<synchronous>, transform_indices = @transform_0, window_bounds = array<i64: 16, 2048>}, {transform_indices = @transform_1, window_bounds = array<i64: 2048, 128>}, {transform_indices = @transform_2, window_bounds = array<i64: 1, 128>}, {transform_indices = @transform_3, window_bounds = array<i64: 16, 128>}]} {
    %c0 = arith.constant 0 : index
    %c0_0 = arith.constant 0 : index
    %0 = vector.load %arg1[%c0, %c0_0] : memref<16x2048xf32, #tpu.memory_space<vmem>>, vector<16x2048xf32>
    %1 = arith.truncf %0 : vector<16x2048xf32> to vector<16x2048xbf16>
    %c0_1 = arith.constant 0 : index
    %c0_2 = arith.constant 0 : index
    %2 = vector.load %arg2[%c0_1, %c0_2] : memref<2048x128xbf16, #tpu.memory_space<vmem>>, vector<2048x128xbf16>
    %cst = arith.constant dense<0.000000e+00> : vector<16x128xf32>
    %3 = tpu.matmul %1, %2, %cst {dimension_numbers = #tpu.dot_dimension_numbers<[1], [0], [0], [1], [0, 0, 1, 1], [], []>} : vector<16x2048xbf16>, vector<2048x128xbf16>, vector<16x128xf32> -> vector<16x128xf32>
    %c0_3 = arith.constant 0 : index
    %c0_4 = arith.constant 0 : index
    %4 = vector.load %arg3[%c0_3, %c0_4] : memref<1x128xf32, #tpu.memory_space<vmem>>, vector<1x128xf32>
    %5 = vector.broadcast %4 : vector<1x128xf32> to vector<16x128xf32>
    %6 = arith.addf %3, %5 : vector<16x128xf32>
    %c0_5 = arith.constant 0 : index
    %c0_6 = arith.constant 0 : index
    %7 = vector.load %arg4[%c0_5, %c0_6] : memref<16x128xf32, #tpu.memory_space<vmem>>, vector<16x128xf32>
    tpu.vector_store %arg4[%c0_5, %c0_6], %6 {strides = array<i32>} : memref<16x128xf32, #tpu.memory_space<vmem>>, vector<16x128xf32>,
    return
  }
  func.func @transform_0(%arg0: i32) -> (i32, i32) {
    %c0_i32 = arith.constant 0 : i32
    %c0_i32_0 = arith.constant 0 : i32
    %c0_i32_1 = arith.constant 0 : i32
    return %c0_i32, %c0_i32_0 : i32, i32
  }
  func.func @transform_1(%arg0: i32) -> (i32, i32) {
    %c0_i32 = arith.constant 0 : i32
    %c0_i32_0 = arith.constant 0 : i32
    return %c0_i32, %arg0 : i32, i32
  }
  func.func @transform_2(%arg0: i32) -> (i32, i32) {
    %c0_i32 = arith.constant 0 : i32
    %c0_i32_0 = arith.constant 0 : i32
    return %c0_i32, %arg0 : i32, i32
  }
  func.func @transform_3(%arg0: i32) -> (i32, i32) {
    %c0_i32 = arith.constant 0 : i32
    %c0_i32_0 = arith.constant 0 : i32
    return %c0_i32, %arg0 : i32, i32
  }
}

</mosaic_0001>

<llo_original>
// kernel: tpu_custom_call.1
$region0: #{tpu_custom_call.1}
  #allocation0 [shape = 'u32[]', space=smem, size = 0x4, offset = 0x4, fixed_abs, tag = 'smem constant byte address 0x4 - core index']
  #allocation1 [shape = 'u32[144,128]{1,0:T(1,128)}', space=vmem, size = 0x12000, scoped, tag = 'internal scratch']
  %s0 = inlined_call_operand.hbm [shape: f32[16,2048], index: 0, kind: input, shape index: {}]
  %s1 = inlined_call_operand.hbm [shape: bf16[2048,384], index: 1, kind: input, shape index: {}]
  %s2 = inlined_call_operand.hbm [shape: f32[1,384], index: 2, kind: input, shape index: {}]
  %s3 = inlined_call_operand.hbm [shape: f32[16,384], index: 3, kind: output, shape index: {}]
  %s4 = sld [smem:[#allocation0]]
  $region57: #{tpu_custom_call.1} parent=0
    _
  %s6 = ssub.s32 1, %s4
  %s7 = scalar_select 0, %s6, %s4
  $region1: #{tpu_custom_call.1} parent=0
    #allocation2 [shape = 'u8[131072]{0}', space=vmem, size = 0x20000, scoped, tag = 'input window, operand 0, single buffered']
    #allocation3 [shape = 's32[2]{0}', space=sflag, size = 0x8, scoped, tag = 'scoped memory for tpu_custom_call.1']
    #allocation4 [shape = 's32[2]{0}', space=sflag, size = 0x8, scoped, tag = 'scoped memory for tpu_custom_call.1']
    #allocation5 [shape = 'u8[1048576]{0}', space=vmem, size = 0x100000, scoped, tag = 'input window, operand 1']
    #allocation6 [shape = 's32[2]{0}', space=sflag, size = 0x8, scoped, tag = 'scoped memory for tpu_custom_call.1']
    #allocation7 [shape = 'u8[1024]{0}', space=vmem, size = 0x400, scoped, tag = 'input window, operand 2']
    #allocation8 [shape = 'u8[16384]{0}', space=vmem, size = 0x4000, scoped, tag = 'output window, operand 0']
    %8 = vsyncpa [#allocation3], 0
    %9 = vsyncpa [#allocation6], 0
    %s10 = scalar_lea.sflag [#allocation6], 1
    %11 = vsyncpa %s10, 0
    %12 = vsyncpa [#allocation4], 0
    %s13 = scalar_lea.sflag [#allocation4], 1
    %14 = vsyncpa %s13, 0
    loop: start=0, step=1, limit=5
    $region2: #{tpu_custom_call.1} parent=1 // loop_pre_header
      _
    $region3: #{tpu_custom_call.1} parent=1 // loop_header
      %s16 = sphi 0, %s20
      %p17 = scmp.ge.s32.totalorder %s16, 5
      %s24 = sphi 0, %s24
      %s26 = sphi 0, %s24
      %s27 = sphi 0, %s26
      %s41 = sphi 0, %s27
      %s47 = sphi 0, %s49
      %s50 = sphi 0, %s47
      %s51 = sphi 0, %s50
      %s67 = sphi 0, %s51
      %s73 = sphi 0, %s75
      %s76 = sphi 0, %s73
      %s77 = sphi 0, %s76
      %s93 = sphi 0, %s77
      %s99 = sphi 0, %s101
      %s102 = sphi 0, %s99
      %s103 = sphi 0, %s102
      %s119 = sphi 0, %s103
    $region4: #{tpu_custom_call.1} parent=1 // loop_header_branch
      %19 = sbr.rel (%p17) target = $region8
    $region5: #{tpu_custom_call.1} parent=1 // loop_body
      %s21 = ssub.s32 %s16, 1
      %s22 = ssub.s32 %s16, 2
      %s23 = sadd.s32 %s16, 1
      %s25 = sadd.s32 %s24, 1
      %p28 = scmp.eq.s32.totalorder %s16, 2
      %p29 = scmp.ne.s32.totalorder %s24, %s26
      %p30 = scmp.eq.s32.totalorder %s16, 0
      %p31 = por %p29, %p30
      %p32 = scmp.ne.s32.totalorder %s24, %s26
      %p33 = scmp.eq.s32.totalorder %s21, 2
      %p34 = por %p32, %p33
      %p35 = scmp.ne.s32.totalorder %s26, %s27
      %p36 = scmp.eq.s32.totalorder %s21, 0
      %p37 = por %p35, %p36
      %p38 = scmp.ne.s32.totalorder %s26, %s27
      %p39 = scmp.eq.s32.totalorder %s22, 2
      %p40 = por %p38, %p39
      %p42 = scmp.ne.s32.totalorder %s27, %s41
      %p43 = scmp.eq.s32.totalorder %s22, 0
      %p44 = por %p42, %p43
      %s45 = ssub.s32 %s16, %s23
      %p46 = scmp.eq.s32.totalorder %s45, 0
      %s48 = sadd.s32 %s47, 1
      %s49 = scalar_select %p46, %s47, %s48
      %p52 = pneg %p46
      %p53 = scmp.eq.s32.totalorder %s16, 2
      %p54 = por %p52, %p53
      %p55 = scmp.ne.s32.totalorder %s47, %s50
      %p56 = scmp.eq.s32.totalorder %s16, 0
      %p57 = por %p55, %p56
      %p58 = scmp.ne.s32.totalorder %s47, %s50
      %p59 = scmp.eq.s32.totalorder %s21, 2
      %p60 = por %p58, %p59
      %p61 = scmp.ne.s32.totalorder %s50, %s51
      %p62 = scmp.eq.s32.totalorder %s21, 0
      %p63 = por %p61, %p62
      %p64 = scmp.ne.s32.totalorder %s50, %s51
      %p65 = scmp.eq.s32.totalorder %s22, 2
      %p66 = por %p64, %p65
      %p68 = scmp.ne.s32.totalorder %s51, %s67
      %p69 = scmp.eq.s32.totalorder %s22, 0
      %p70 = por %p68, %p69
      %s71 = ssub.s32 %s16, %s23
      %p72 = scmp.eq.s32.totalorder %s71, 0
      %s74 = sadd.s32 %s73, 1
      %s75 = scalar_select %p72, %s73, %s74
      %p78 = pneg %p72
      %p79 = scmp.eq.s32.totalorder %s16, 2
      %p80 = por %p78, %p79
      %p81 = scmp.ne.s32.totalorder %s73, %s76
      %p82 = scmp.eq.s32.totalorder %s16, 0
      %p83 = por %p81, %p82
      %p84 = scmp.ne.s32.totalorder %s73, %s76
      %p85 = scmp.eq.s32.totalorder %s21, 2
      %p86 = por %p84, %p85
      %p87 = scmp.ne.s32.totalorder %s76, %s77
      %p88 = scmp.eq.s32.totalorder %s21, 0
      %p89 = por %p87, %p88
      %p90 = scmp.ne.s32.totalorder %s76, %s77
      %p91 = scmp.eq.s32.totalorder %s22, 2
      %p92 = por %p90, %p91
      %p94 = scmp.ne.s32.totalorder %s77, %s93
      %p95 = scmp.eq.s32.totalorder %s22, 0
      %p96 = por %p94, %p95
      %s97 = ssub.s32 %s16, %s23
      %p98 = scmp.eq.s32.totalorder %s97, 0
      %s100 = sadd.s32 %s99, 1
      %s101 = scalar_select %p98, %s99, %s100
      %p104 = pneg %p98
      %p105 = scmp.eq.s32.totalorder %s16, 2
      %p106 = por %p104, %p105
      %p107 = scmp.ne.s32.totalorder %s99, %s102
      %p108 = scmp.eq.s32.totalorder %s16, 0
      %p109 = por %p107, %p108
      %p110 = scmp.ne.s32.totalorder %s99, %s102
      %p111 = scmp.eq.s32.totalorder %s21, 2
      %p112 = por %p110, %p111
      %p113 = scmp.ne.s32.totalorder %s102, %s103
      %p114 = scmp.eq.s32.totalorder %s21, 0
      %p115 = por %p113, %p114
      %p116 = scmp.ne.s32.totalorder %s102, %s103
      %p117 = scmp.eq.s32.totalorder %s22, 2
      %p118 = por %p116, %p117
      %p120 = scmp.ne.s32.totalorder %s103, %s119
      %p121 = scmp.eq.s32.totalorder %s22, 0
      %p122 = por %p120, %p121
      %p123 = scmp.le.s32.totalorder 1, %s16
      %p124 = scmp.lt.s32.totalorder %s16, 4
      %p125 = pnand %p123, %p124
      %p126 = pneg %p125
      // Predicated region
      $region9: #{tpu_custom_call.1} parent=5 // pred_check
        _
      $region10: #{tpu_custom_call.1} parent=5 // pred_check_branch
        %128 = sbr.rel (%p125) target = $region12
      $region11: #{tpu_custom_call.1} parent=5 // pred_region
        %s129 = ssub.s32 %s16, 1
        // Predicated region
        $region13: #{tpu_custom_call.1} parent=11 // pred_check
          %p130 = pneg %p37
        $region14: #{tpu_custom_call.1} parent=11 // pred_check_branch
          %132 = sbr.rel (%p130) target = $region16
        $region15: #{tpu_custom_call.1} parent=11 // pred_region
          %s134 = ssub.s32 4096, 4096
          %135 = vsyncadd [#allocation3], %s134
          %s136 = sshll.u32 [#allocation2], 4
          %s137 = int_to_ptr.vmem [resolvable:$true] %s136
          %142 = dma.hbm_to_vmem [thread:$0]  %s0, 4096, %s137, [#allocation3], 2048, 2048, 128
        $region16: #{tpu_custom_call.1} parent=11 // pred_fallthru
          _
      $region12: #{tpu_custom_call.1} parent=5 // pred_fallthru
        _
      %p143 = scmp.lt.s32.totalorder %s16, 3
      // Predicated region
      $region17: #{tpu_custom_call.1} parent=5 // pred_check
        %p144 = pneg %p143
      $region18: #{tpu_custom_call.1} parent=5 // pred_check_branch
        %146 = sbr.rel (%p144) target = $region20
      $region19: #{tpu_custom_call.1} parent=5 // pred_region
        // Predicated region
        $region21: #{tpu_custom_call.1} parent=19 // pred_check
          %p147 = pneg %p57
        $region22: #{tpu_custom_call.1} parent=19 // pred_check_branch
          %149 = sbr.rel (%p147) target = $region24
        $region23: #{tpu_custom_call.1} parent=19 // pred_region
          %s150 = sand.u32 %s16, 1
          %s151 = scalar_lea.sflag [#allocation6], %s150
          %s152 = sand.u32 %s47, 1
          %s153 = smul.addr %s152, 1024
          %s154 = scalar_lea.vmem [#allocation5], %s153
          %s156 = ssub.s32 16384, 16384
          %157 = vsyncadd %s151, %s156
          %s158 = smul.addr %s16, 64
          %s159 = scalar_lea.hbm %s1, %s158
          %s160 = sshll.u32 %s154, 4
          %s161 = int_to_ptr.vmem [resolvable:$true] %s160
          %166 = dma.hbm_to_vmem [thread:$0]  %s159, 16384, %s161, %s151, 192, 64, 4
        $region24: #{tpu_custom_call.1} parent=19 // pred_fallthru
          _
        // Predicated region
        $region25: #{tpu_custom_call.1} parent=19 // pred_check
          %p167 = pneg %p83
        $region26: #{tpu_custom_call.1} parent=19 // pred_check_branch
          %169 = sbr.rel (%p167) target = $region28
        $region27: #{tpu_custom_call.1} parent=19 // pred_region
          %s170 = sand.u32 %s16, 1
          %s171 = scalar_lea.sflag [#allocation6], %s170
          %s172 = sand.u32 %s73, 1
          %s173 = scalar_lea.vmem [#allocation7], %s172
          %s175 = ssub.s32 16, 16
          %176 = vsyncadd %s171, %s175
          %s177 = smul.addr %s16, 16
          %s178 = scalar_lea.hbm %s2, %s177
          %s180 = sshll.u32 %s173, 4
          %s181 = int_to_ptr.vmem [resolvable:$true] %s180
          %183 = dma.hbm_to_vmem [thread:$0]  %s178, 16, %s181, %s171
        $region28: #{tpu_custom_call.1} parent=19 // pred_fallthru
          _
      $region20: #{tpu_custom_call.1} parent=5 // pred_fallthru
        _
      %p184 = scmp.le.s32.totalorder 1, %s16
      %p185 = scmp.lt.s32.totalorder %s16, 4
      %p186 = pnand %p184, %p185
      %p187 = pneg %p186
      // Predicated region
      $region29: #{tpu_custom_call.1} parent=5 // pred_check
        _
      $region30: #{tpu_custom_call.1} parent=5 // pred_check_branch
        %189 = sbr.rel (%p186) target = $region32
      $region31: #{tpu_custom_call.1} parent=5 // pred_region
        %s190 = ssub.s32 %s16, 1
        // Predicated region
        $region33: #{tpu_custom_call.1} parent=31 // pred_check
          %p191 = pneg %p37
        $region34: #{tpu_custom_call.1} parent=31 // pred_check_branch
          %193 = sbr.rel (%p191) target = $region36
        $region35: #{tpu_custom_call.1} parent=31 // pred_region
          %194 = dma.done [#allocation3], 4096
        $region36: #{tpu_custom_call.1} parent=31 // pred_fallthru
          _
        %s195 = sand.u32 %s21, 1
        %s196 = scalar_lea.sflag [#allocation6], %s195
        %s197 = sand.u32 %s50, 1
        %s198 = smul.addr %s197, 1024
        %s199 = scalar_lea.vmem [#allocation5], %s198
        // Predicated region
        $region37: #{tpu_custom_call.1} parent=31 // pred_check
          %p200 = pneg %p63
        $region38: #{tpu_custom_call.1} parent=31 // pred_check_branch
          %202 = sbr.rel (%p200) target = $region40
        $region39: #{tpu_custom_call.1} parent=31 // pred_region
          %203 = dma.done %s196, 16384
        $region40: #{tpu_custom_call.1} parent=31 // pred_fallthru
          _
        %s204 = sand.u32 %s21, 1
        %s205 = scalar_lea.sflag [#allocation6], %s204
        %s206 = sand.u32 %s76, 1
        %s207 = scalar_lea.vmem [#allocation7], %s206
        // Predicated region
        $region41: #{tpu_custom_call.1} parent=31 // pred_check
          %p208 = pneg %p89
        $region42: #{tpu_custom_call.1} parent=31 // pred_check_branch
          %210 = sbr.rel (%p208) target = $region44
        $region43: #{tpu_custom_call.1} parent=31 // pred_region
          %211 = dma.done %s205, 16
        $region44: #{tpu_custom_call.1} parent=31 // pred_fallthru
          _
        %p212 = pneg %p37
        %p213 = pneg %p34
        %s214 = sand.u32 %s21, 1
        %s215 = scalar_lea.sflag [#allocation6], %s214
        %s216 = sand.u32 %s50, 1
        %s217 = smul.addr %s216, 1024
        %s218 = scalar_lea.vmem [#allocation5], %s217
        %p219 = pneg %p63
        %p220 = pneg %p60
        %s221 = sand.u32 %s21, 1
        %s222 = scalar_lea.sflag [#allocation6], %s221
        %s223 = sand.u32 %s76, 1
        %s224 = scalar_lea.vmem [#allocation7], %s223
        %p225 = pneg %p89
        %p226 = pneg %p86
        %p227 = pneg %p115
        %p228 = pneg %p112
        %s229 = sand.u32 %s102, 1
        %s230 = scalar_lea.sflag [#allocation4], %s229
        %s231 = sand.u32 %s102, 1
        %s232 = smul.addr %s231, 16
        %s233 = scalar_lea.vmem [#allocation8], %s232
        %v235 = vld [vmem:[#allocation2] sm:$0xff]
        %v236 = vld [vmem:[#allocation2 + $0x8] sm:$0xff]
        %v237 = vld [vmem:[#allocation2 + $0x10] sm:$0xff]
        %v238 = vld [vmem:[#allocation2 + $0x18] sm:$0xff]
        %v239 = vld [vmem:[#allocation2 + $0x20] sm:$0xff]
        %v240 = vld [vmem:[#allocation2 + $0x28] sm:$0xff]
        %v241 = vld [vmem:[#allocation2 + $0x30] sm:$0xff]
        %v242 = vld [vmem:[#allocation2 + $0x38] sm:$0xff]
        %v243 = vld [vmem:[#allocation2 + $0x40] sm:$0xff]
        %v244 = vld [vmem:[#allocation2 + $0x48] sm:$0xff]
        %v245 = vld [vmem:[#allocation2 + $0x50] sm:$0xff]
        %v246 = vld [vmem:[#allocation2 + $0x58] sm:$0xff]
        %v247 = vld [vmem:[#allocation2 + $0x60] sm:$0xff]
        %v248 = vld [vmem:[#allocation2 + $0x68] sm:$0xff]
        %v249 = vld [vmem:[#allocation2 + $0x70] sm:$0xff]
        %v250 = vld [vmem:[#allocation2 + $0x78] sm:$0xff]
        %v251 = vld [vmem:[#allocation2 + $0x80] sm:$0xff]
        %v252 = vld [vmem:[#allocation2 + $0x88] sm:$0xff]
        %v253 = vld [vmem:[#allocation2 + $0x90] sm:$0xff]
        %v254 = vld [vmem:[#allocation2 + $0x98] sm:$0xff]
        %v255 = vld [vmem:[#allocation2 + $0xa0] sm:$0xff]
        %v256 = vld [vmem:[#allocation2 + $0xa8] sm:$0xff]
        %v257 = vld [vmem:[#allocation2 + $0xb0] sm:$0xff]
        %v258 = vld [vmem:[#allocation2 + $0xb8] sm:$0xff]
        %v259 = vld [vmem:[#allocation2 + $0xc0] sm:$0xff]
        %v260 = vld [vmem:[#allocation2 + $0xc8] sm:$0xff]
        %v261 = vld [vmem:[#allocation2 + $0xd0] sm:$0xff]
        %v262 = vld [vmem:[#allocation2 + $0xd8] sm:$0xff]
        %v263 = vld [vmem:[#allocation2 + $0xe0] sm:$0xff]
        %v264 = vld [vmem:[#allocation2 + $0xe8] sm:$0xff]
        %v265 = vld [vmem:[#allocation2 + $0xf0] sm:$0xff]
        %v266 = vld [vmem:[#allocation2 + $0xf8] sm:$0xff]
        %v267 = vpack.c.bf16 %v251, %v235
        %v268 = vpack.c.bf16 %v252, %v236
        %v269 = vpack.c.bf16 %v253, %v237
        %v270 = vpack.c.bf16 %v254, %v238
        %v271 = vpack.c.bf16 %v255, %v239
        %v272 = vpack.c.bf16 %v256, %v240
        %v273 = vpack.c.bf16 %v257, %v241
        %v274 = vpack.c.bf16 %v258, %v242
        %v275 = vpack.c.bf16 %v259, %v243
        %v276 = vpack.c.bf16 %v260, %v244
        %v277 = vpack.c.bf16 %v261, %v245
        %v278 = vpack.c.bf16 %v262, %v246
        %v279 = vpack.c.bf16 %v263, %v247
        %v280 = vpack.c.bf16 %v264, %v248
        %v281 = vpack.c.bf16 %v265, %v249
        %v282 = vpack.c.bf16 %v266, %v250
        %v283 = vld [vmem:[%s199] sm:$0xf]
        %v284 = vld [vmem:[%s199 + $0x4] sm:$0xf]
        %v285 = vld [vmem:[%s199 + $0x8] sm:$0xf]
        %v286 = vld [vmem:[%s199 + $0xc] sm:$0xf]
        %v287 = vld [vmem:[%s199 + $0x10] sm:$0xf]
        %v288 = vld [vmem:[%s199 + $0x14] sm:$0xf]
        %v289 = vld [vmem:[%s199 + $0x18] sm:$0xf]
        %v290 = vld [vmem:[%s199 + $0x1c] sm:$0xf]
        %v291 = vld [vmem:[%s199 + $0x20] sm:$0xf]
        %v292 = vld [vmem:[%s199 + $0x24] sm:$0xf]
        %v293 = vld [vmem:[%s199 + $0x28] sm:$0xf]
        %v294 = vld [vmem:[%s199 + $0x2c] sm:$0xf]
        %v295 = vld [vmem:[%s199 + $0x30] sm:$0xf]
        %v296 = vld [vmem:[%s199 + $0x34] sm:$0xf]
        %v297 = vld [vmem:[%s199 + $0x38] sm:$0xf]
        %v298 = vld [vmem:[%s199 + $0x3c] sm:$0xf]
        %v299 = vld [vmem:[%s199 + $0x40] sm:$0xf]
        %v300 = vld [vmem:[%s199 + $0x44] sm:$0xf]
        %v301 = vld [vmem:[%s199 + $0x48] sm:$0xf]
        %v302 = vld [vmem:[%s199 + $0x4c] sm:$0xf]
        %v303 = vld [vmem:[%s199 + $0x50] sm:$0xf]
        %v304 = vld [vmem:[%s199 + $0x54] sm:$0xf]
        %v305 = vld [vmem:[%s199 + $0x58] sm:$0xf]
        %v306 = vld [vmem:[%s199 + $0x5c] sm:$0xf]
        %v307 = vld [vmem:[%s199 + $0x60] sm:$0xf]
        %v308 = vld [vmem:[%s199 + $0x64] sm:$0xf]
        %v309 = vld [vmem:[%s199 + $0x68] sm:$0xf]
        %v310 = vld [vmem:[%s199 + $0x6c] sm:$0xf]
        %v311 = vld [vmem:[%s199 + $0x70] sm:$0xf]
        %v312 = vld [vmem:[%s199 + $0x74] sm:$0xf]
        %v313 = vld [vmem:[%s199 + $0x78] sm:$0xf]
        %v314 = vld [vmem:[%s199 + $0x7c] sm:$0xf]
        %v315 = vld [vmem:[%s199 + $0x80] sm:$0xf]
        %v316 = vld [vmem:[%s199 + $0x84] sm:$0xf]
        %v317 = vld [vmem:[%s199 + $0x88] sm:$0xf]
        %v318 = vld [vmem:[%s199 + $0x8c] sm:$0xf]
        %v319 = vld [vmem:[%s199 + $0x90] sm:$0xf]
        %v320 = vld [vmem:[%s199 + $0x94] sm:$0xf]
        %v321 = vld [vmem:[%s199 + $0x98] sm:$0xf]
        %v322 = vld [vmem:[%s199 + $0x9c] sm:$0xf]
        %v323 = vld [vmem:[%s199 + $0xa0] sm:$0xf]
        %v324 = vld [vmem:[%s199 + $0xa4] sm:$0xf]
        %v325 = vld [vmem:[%s199 + $0xa8] sm:$0xf]
        %v326 = vld [vmem:[%s199 + $0xac] sm:$0xf]
        %v327 = vld [vmem:[%s199 + $0xb0] sm:$0xf]
        %v328 = vld [vmem:[%s199 + $0xb4] sm:$0xf]
        %v329 = vld [vmem:[%s199 + $0xb8] sm:$0xf]
        %v330 = vld [vmem:[%s199 + $0xbc] sm:$0xf]
        %v331 = vld [vmem:[%s199 + $0xc0] sm:$0xf]
        %v332 = vld [vmem:[%s199 + $0xc4] sm:$0xf]
        %v333 = vld [vmem:[%s199 + $0xc8] sm:$0xf]
        %v334 = vld [vmem:[%s199 + $0xcc] sm:$0xf]
        %v335 = vld [vmem:[%s199 + $0xd0] sm:$0xf]
        %v336 = vld [vmem:[%s199 + $0xd4] sm:$0xf]
        %v337 = vld [vmem:[%s199 + $0xd8] sm:$0xf]
        %v338 = vld [vmem:[%s199 + $0xdc] sm:$0xf]
        %v339 = vld [vmem:[%s199 + $0xe0] sm:$0xf]
        %v340 = vld [vmem:[%s199 + $0xe4] sm:$0xf]
        %v341 = vld [vmem:[%s199 + $0xe8] sm:$0xf]
        %v342 = vld [vmem:[%s199 + $0xec] sm:$0xf]
        %v343 = vld [vmem:[%s199 + $0xf0] sm:$0xf]
        %v344 = vld [vmem:[%s199 + $0xf4] sm:$0xf]
        %v345 = vld [vmem:[%s199 + $0xf8] sm:$0xf]
        %v346 = vld [vmem:[%s199 + $0xfc] sm:$0xf]
        %v347 = vld [vmem:[%s199 + $0x100] sm:$0xf]
        %v348 = vld [vmem:[%s199 + $0x104] sm:$0xf]
        %v349 = vld [vmem:[%s199 + $0x108] sm:$0xf]
        %v350 = vld [vmem:[%s199 + $0x10c] sm:$0xf]
        %v351 = vld [vmem:[%s199 + $0x110] sm:$0xf]
        %v352 = vld [vmem:[%s199 + $0x114] sm:$0xf]
        %v353 = vld [vmem:[%s199 + $0x118] sm:$0xf]
        %v354 = vld [vmem:[%s199 + $0x11c] sm:$0xf]
        %v355 = vld [vmem:[%s199 + $0x120] sm:$0xf]
        %v356 = vld [vmem:[%s199 + $0x124] sm:$0xf]
        %v357 = vld [vmem:[%s199 + $0x128] sm:$0xf]
        %v358 = vld [vmem:[%s199 + $0x12c] sm:$0xf]
        %v359 = vld [vmem:[%s199 + $0x130] sm:$0xf]
        %v360 = vld [vmem:[%s199 + $0x134] sm:$0xf]
        %v361 = vld [vmem:[%s199 + $0x138] sm:$0xf]
        %v362 = vld [vmem:[%s199 + $0x13c] sm:$0xf]
        %v363 = vld [vmem:[%s199 + $0x140] sm:$0xf]
        %v364 = vld [vmem:[%s199 + $0x144] sm:$0xf]
        %v365 = vld [vmem:[%s199 + $0x148] sm:$0xf]
        %v366 = vld [vmem:[%s199 + $0x14c] sm:$0xf]
        %v367 = vld [vmem:[%s199 + $0x150] sm:$0xf]
        %v368 = vld [vmem:[%s199 + $0x154] sm:$0xf]
        %v369 = vld [vmem:[%s199 + $0x158] sm:$0xf]
        %v370 = vld [vmem:[%s199 + $0x15c] sm:$0xf]
        %v371 = vld [vmem:[%s199 + $0x160] sm:$0xf]
        %v372 = vld [vmem:[%s199 + $0x164] sm:$0xf]
        %v373 = vld [vmem:[%s199 + $0x168] sm:$0xf]
        %v374 = vld [vmem:[%s199 + $0x16c] sm:$0xf]
        %v375 = vld [vmem:[%s199 + $0x170] sm:$0xf]
        %v376 = vld [vmem:[%s199 + $0x174] sm:$0xf]
        %v377 = vld [vmem:[%s199 + $0x178] sm:$0xf]
        %v378 = vld [vmem:[%s199 + $0x17c] sm:$0xf]
        %v379 = vld [vmem:[%s199 + $0x180] sm:$0xf]
        %v380 = vld [vmem:[%s199 + $0x184] sm:$0xf]
        %v381 = vld [vmem:[%s199 + $0x188] sm:$0xf]
        %v382 = vld [vmem:[%s199 + $0x18c] sm:$0xf]
        %v383 = vld [vmem:[%s199 + $0x190] sm:$0xf]
        %v384 = vld [vmem:[%s199 + $0x194] sm:$0xf]
        %v385 = vld [vmem:[%s199 + $0x198] sm:$0xf]
        %v386 = vld [vmem:[%s199 + $0x19c] sm:$0xf]
        %v387 = vld [vmem:[%s199 + $0x1a0] sm:$0xf]
        %v388 = vld [vmem:[%s199 + $0x1a4] sm:$0xf]
        %v389 = vld [vmem:[%s199 + $0x1a8] sm:$0xf]
        %v390 = vld [vmem:[%s199 + $0x1ac] sm:$0xf]
        %v391 = vld [vmem:[%s199 + $0x1b0] sm:$0xf]
        %v392 = vld [vmem:[%s199 + $0x1b4] sm:$0xf]
        %v393 = vld [vmem:[%s199 + $0x1b8] sm:$0xf]
        %v394 = vld [vmem:[%s199 + $0x1bc] sm:$0xf]
        %v395 = vld [vmem:[%s199 + $0x1c0] sm:$0xf]
        %v396 = vld [vmem:[%s199 + $0x1c4] sm:$0xf]
        %v397 = vld [vmem:[%s199 + $0x1c8] sm:$0xf]
        %v398 = vld [vmem:[%s199 + $0x1cc] sm:$0xf]
        %v399 = vld [vmem:[%s199 + $0x1d0] sm:$0xf]
        %v400 = vld [vmem:[%s199 + $0x1d4] sm:$0xf]
        %v401 = vld [vmem:[%s199 + $0x1d8] sm:$0xf]
        %v402 = vld [vmem:[%s199 + $0x1dc] sm:$0xf]
        %v403 = vld [vmem:[%s199 + $0x1e0] sm:$0xf]
        %v404 = vld [vmem:[%s199 + $0x1e4] sm:$0xf]
        %v405 = vld [vmem:[%s199 + $0x1e8] sm:$0xf]
        %v406 = vld [vmem:[%s199 + $0x1ec] sm:$0xf]
        %v407 = vld [vmem:[%s199 + $0x1f0] sm:$0xf]
        %v408 = vld [vmem:[%s199 + $0x1f4] sm:$0xf]
        %v409 = vld [vmem:[%s199 + $0x1f8] sm:$0xf]
        %v410 = vld [vmem:[%s199 + $0x1fc] sm:$0xf]
        %v411 = vld [vmem:[%s199 + $0x200] sm:$0xf]
        %v412 = vld [vmem:[%s199 + $0x204] sm:$0xf]
        %v413 = vld [vmem:[%s199 + $0x208] sm:$0xf]
        %v414 = vld [vmem:[%s199 + $0x20c] sm:$0xf]
        %v415 = vld [vmem:[%s199 + $0x210] sm:$0xf]
        %v416 = vld [vmem:[%s199 + $0x214] sm:$0xf]
        %v417 = vld [vmem:[%s199 + $0x218] sm:$0xf]
        %v418 = vld [vmem:[%s199 + $0x21c] sm:$0xf]
        %v419 = vld [vmem:[%s199 + $0x220] sm:$0xf]
        %v420 = vld [vmem:[%s199 + $0x224] sm:$0xf]
        %v421 = vld [vmem:[%s199 + $0x228] sm:$0xf]
        %v422 = vld [vmem:[%s199 + $0x22c] sm:$0xf]
        %v423 = vld [vmem:[%s199 + $0x230] sm:$0xf]
        %v424 = vld [vmem:[%s199 + $0x234] sm:$0xf]
        %v425 = vld [vmem:[%s199 + $0x238] sm:$0xf]
        %v426 = vld [vmem:[%s199 + $0x23c] sm:$0xf]
        %v427 = vld [vmem:[%s199 + $0x240] sm:$0xf]
        %v428 = vld [vmem:[%s199 + $0x244] sm:$0xf]
        %v429 = vld [vmem:[%s199 + $0x248] sm:$0xf]
        %v430 = vld [vmem:[%s199 + $0x24c] sm:$0xf]
        %v431 = vld [vmem:[%s199 + $0x250] sm:$0xf]
        %v432 = vld [vmem:[%s199 + $0x254] sm:$0xf]
        %v433 = vld [vmem:[%s199 + $0x258] sm:$0xf]
        %v434 = vld [vmem:[%s199 + $0x25c] sm:$0xf]
        %v435 = vld [vmem:[%s199 + $0x260] sm:$0xf]
        %v436 = vld [vmem:[%s199 + $0x264] sm:$0xf]
        %v437 = vld [vmem:[%s199 + $0x268] sm:$0xf]
        %v438 = vld [vmem:[%s199 + $0x26c] sm:$0xf]
        %v439 = vld [vmem:[%s199 + $0x270] sm:$0xf]
        %v440 = vld [vmem:[%s199 + $0x274] sm:$0xf]
        %v441 = vld [vmem:[%s199 + $0x278] sm:$0xf]
        %v442 = vld [vmem:[%s199 + $0x27c] sm:$0xf]
        %v443 = vld [vmem:[%s199 + $0x280] sm:$0xf]
        %v444 = vld [vmem:[%s199 + $0x284] sm:$0xf]
        %v445 = vld [vmem:[%s199 + $0x288] sm:$0xf]
        %v446 = vld [vmem:[%s199 + $0x28c] sm:$0xf]
        %v447 = vld [vmem:[%s199 + $0x290] sm:$0xf]
        %v448 = vld [vmem:[%s199 + $0x294] sm:$0xf]
        %v449 = vld [vmem:[%s199 + $0x298] sm:$0xf]
        %v450 = vld [vmem:[%s199 + $0x29c] sm:$0xf]
        %v451 = vld [vmem:[%s199 + $0x2a0] sm:$0xf]
        %v452 = vld [vmem:[%s199 + $0x2a4] sm:$0xf]
        %v453 = vld [vmem:[%s199 + $0x2a8] sm:$0xf]
        %v454 = vld [vmem:[%s199 + $0x2ac] sm:$0xf]
        %v455 = vld [vmem:[%s199 + $0x2b0] sm:$0xf]
        %v456 = vld [vmem:[%s199 + $0x2b4] sm:$0xf]
        %v457 = vld [vmem:[%s199 + $0x2b8] sm:$0xf]
        %v458 = vld [vmem:[%s199 + $0x2bc] sm:$0xf]
        %v459 = vld [vmem:[%s199 + $0x2c0] sm:$0xf]
        %v460 = vld [vmem:[%s199 + $0x2c4] sm:$0xf]
        %v461 = vld [vmem:[%s199 + $0x2c8] sm:$0xf]
        %v462 = vld [vmem:[%s199 + $0x2cc] sm:$0xf]
        %v463 = vld [vmem:[%s199 + $0x2d0] sm:$0xf]
        %v464 = vld [vmem:[%s199 + $0x2d4] sm:$0xf]
        %v465 = vld [vmem:[%s199 + $0x2d8] sm:$0xf]
        %v466 = vld [vmem:[%s199 + $0x2dc] sm:$0xf]
        %v467 = vld [vmem:[%s199 + $0x2e0] sm:$0xf]
        %v468 = vld [vmem:[%s199 + $0x2e4] sm:$0xf]
        %v469 = vld [vmem:[%s199 + $0x2e8] sm:$0xf]
        %v470 = vld [vmem:[%s199 + $0x2ec] sm:$0xf]
        %v471 = vld [vmem:[%s199 + $0x2f0] sm:$0xf]
        %v472 = vld [vmem:[%s199 + $0x2f4] sm:$0xf]
        %v473 = vld [vmem:[%s199 + $0x2f8] sm:$0xf]
        %v474 = vld [vmem:[%s199 + $0x2fc] sm:$0xf]
        %v475 = vld [vmem:[%s199 + $0x300] sm:$0xf]
        %v476 = vld [vmem:[%s199 + $0x304] sm:$0xf]
        %v477 = vld [vmem:[%s199 + $0x308] sm:$0xf]
        %v478 = vld [vmem:[%s199 + $0x30c] sm:$0xf]
        %v479 = vld [vmem:[%s199 + $0x310] sm:$0xf]
        %v480 = vld [vmem:[%s199 + $0x314] sm:$0xf]
        %v481 = vld [vmem:[%s199 + $0x318] sm:$0xf]
        %v482 = vld [vmem:[%s199 + $0x31c] sm:$0xf]
        %v483 = vld [vmem:[%s199 + $0x320] sm:$0xf]
        %v484 = vld [vmem:[%s199 + $0x324] sm:$0xf]
        %v485 = vld [vmem:[%s199 + $0x328] sm:$0xf]
        %v486 = vld [vmem:[%s199 + $0x32c] sm:$0xf]
        %v487 = vld [vmem:[%s199 + $0x330] sm:$0xf]
        %v488 = vld [vmem:[%s199 + $0x334] sm:$0xf]
        %v489 = vld [vmem:[%s199 + $0x338] sm:$0xf]
        %v490 = vld [vmem:[%s199 + $0x33c] sm:$0xf]
        %v491 = vld [vmem:[%s199 + $0x340] sm:$0xf]
        %v492 = vld [vmem:[%s199 + $0x344] sm:$0xf]
        %v493 = vld [vmem:[%s199 + $0x348] sm:$0xf]
        %v494 = vld [vmem:[%s199 + $0x34c] sm:$0xf]
        %v495 = vld [vmem:[%s199 + $0x350] sm:$0xf]
        %v496 = vld [vmem:[%s199 + $0x354] sm:$0xf]
        %v497 = vld [vmem:[%s199 + $0x358] sm:$0xf]
        %v498 = vld [vmem:[%s199 + $0x35c] sm:$0xf]
        %v499 = vld [vmem:[%s199 + $0x360] sm:$0xf]
        %v500 = vld [vmem:[%s199 + $0x364] sm:$0xf]
        %v501 = vld [vmem:[%s199 + $0x368] sm:$0xf]
        %v502 = vld [vmem:[%s199 + $0x36c] sm:$0xf]
        %v503 = vld [vmem:[%s199 + $0x370] sm:$0xf]
        %v504 = vld [vmem:[%s199 + $0x374] sm:$0xf]
        %v505 = vld [vmem:[%s199 + $0x378] sm:$0xf]
        %v506 = vld [vmem:[%s199 + $0x37c] sm:$0xf]
        %v507 = vld [vmem:[%s199 + $0x380] sm:$0xf]
        %v508 = vld [vmem:[%s199 + $0x384] sm:$0xf]
        %v509 = vld [vmem:[%s199 + $0x388] sm:$0xf]
        %v510 = vld [vmem:[%s199 + $0x38c] sm:$0xf]
        %v511 = vld [vmem:[%s199 + $0x390] sm:$0xf]
        %v512 = vld [vmem:[%s199 + $0x394] sm:$0xf]
        %v513 = vld [vmem:[%s199 + $0x398] sm:$0xf]
        %v514 = vld [vmem:[%s199 + $0x39c] sm:$0xf]
        %v515 = vld [vmem:[%s199 + $0x3a0] sm:$0xf]
        %v516 = vld [vmem:[%s199 + $0x3a4] sm:$0xf]
        %v517 = vld [vmem:[%s199 + $0x3a8] sm:$0xf]
        %v518 = vld [vmem:[%s199 + $0x3ac] sm:$0xf]
        %v519 = vld [vmem:[%s199 + $0x3b0] sm:$0xf]
        %v520 = vld [vmem:[%s199 + $0x3b4] sm:$0xf]
        %v521 = vld [vmem:[%s199 + $0x3b8] sm:$0xf]
        %v522 = vld [vmem:[%s199 + $0x3bc] sm:$0xf]
        %v523 = vld [vmem:[%s199 + $0x3c0] sm:$0xf]
        %v524 = vld [vmem:[%s199 + $0x3c4] sm:$0xf]
        %v525 = vld [vmem:[%s199 + $0x3c8] sm:$0xf]
        %v526 = vld [vmem:[%s199 + $0x3cc] sm:$0xf]
        %v527 = vld [vmem:[%s199 + $0x3d0] sm:$0xf]
        %v528 = vld [vmem:[%s199 + $0x3d4] sm:$0xf]
        %v529 = vld [vmem:[%s199 + $0x3d8] sm:$0xf]
        %v530 = vld [vmem:[%s199 + $0x3dc] sm:$0xf]
        %v531 = vld [vmem:[%s199 + $0x3e0] sm:$0xf]
        %v532 = vld [vmem:[%s199 + $0x3e4] sm:$0xf]
        %v533 = vld [vmem:[%s199 + $0x3e8] sm:$0xf]
        %v534 = vld [vmem:[%s199 + $0x3ec] sm:$0xf]
        %v535 = vld [vmem:[%s199 + $0x3f0] sm:$0xf]
        %v536 = vld [vmem:[%s199 + $0x3f4] sm:$0xf]
        %v537 = vld [vmem:[%s199 + $0x3f8] sm:$0xf]
        %v538 = vld [vmem:[%s199 + $0x3fc] sm:$0xf]
        %v539 = vld [vmem:[%s207] sm:$0x1]
        %v541 = vlaneseq
        %v542 = vshrl.u32 %v541, 7
        %v543 = vsub.s32 0, %v542
        %v544 = vrot.slane %v539, %v543
        %v802 = vunpack.c.l.b16 %v283
        %v803 = vunpack.c.l.b16 %v284
        %v804 = vunpack.c.l.b16 %v285
        %v805 = vunpack.c.l.b16 %v286
        %v806 = vunpack.c.l.b16 %v287
        %v807 = vunpack.c.l.b16 %v288
        %v808 = vunpack.c.l.b16 %v289
        %v809 = vunpack.c.l.b16 %v290
        %v810 = vunpack.c.l.b16 %v291
        %v811 = vunpack.c.l.b16 %v292
        %v812 = vunpack.c.l.b16 %v293
        %v813 = vunpack.c.l.b16 %v294
        %v814 = vunpack.c.l.b16 %v295
        %v815 = vunpack.c.l.b16 %v296
        %v816 = vunpack.c.l.b16 %v297
        %v817 = vunpack.c.l.b16 %v298
        %v818 = vunpack.c.l.b16 %v299
        %v819 = vunpack.c.l.b16 %v300
        %v820 = vunpack.c.l.b16 %v301
        %v821 = vunpack.c.l.b16 %v302
        %v822 = vunpack.c.l.b16 %v303
        %v823 = vunpack.c.l.b16 %v304
        %v824 = vunpack.c.l.b16 %v305
        %v825 = vunpack.c.l.b16 %v306
        %v826 = vunpack.c.l.b16 %v307
        %v827 = vunpack.c.l.b16 %v308
        %v828 = vunpack.c.l.b16 %v309
        %v829 = vunpack.c.l.b16 %v310
        %v830 = vunpack.c.l.b16 %v311
        %v831 = vunpack.c.l.b16 %v312
        %v832 = vunpack.c.l.b16 %v313
        %v833 = vunpack.c.l.b16 %v314
        %v834 = vunpack.c.l.b16 %v315
        %v835 = vunpack.c.l.b16 %v316
        %v836 = vunpack.c.l.b16 %v317
        %v837 = vunpack.c.l.b16 %v318
        %v838 = vunpack.c.l.b16 %v319
        %v839 = vunpack.c.l.b16 %v320
        %v840 = vunpack.c.l.b16 %v321
        %v841 = vunpack.c.l.b16 %v322
        %v842 = vunpack.c.l.b16 %v323
        %v843 = vunpack.c.l.b16 %v324
        %v844 = vunpack.c.l.b16 %v325
        %v845 = vunpack.c.l.b16 %v326
        %v846 = vunpack.c.l.b16 %v327
        %v847 = vunpack.c.l.b16 %v328
        %v848 = vunpack.c.l.b16 %v329
        %v849 = vunpack.c.l.b16 %v330
        %v850 = vunpack.c.l.b16 %v331
        %v851 = vunpack.c.l.b16 %v332
        %v852 = vunpack.c.l.b16 %v333
        %v853 = vunpack.c.l.b16 %v334
        %v854 = vunpack.c.l.b16 %v335
        %v855 = vunpack.c.l.b16 %v336
        %v856 = vunpack.c.l.b16 %v337
        %v857 = vunpack.c.l.b16 %v338
        %v858 = vunpack.c.l.b16 %v339
        %v859 = vunpack.c.l.b16 %v340
        %v860 = vunpack.c.l.b16 %v341
        %v861 = vunpack.c.l.b16 %v342
        %v862 = vunpack.c.l.b16 %v343
        %v863 = vunpack.c.l.b16 %v344
        %v864 = vunpack.c.l.b16 %v345
        %v865 = vunpack.c.l.b16 %v346
        %v866 = vunpack.c.l.b16 %v347
        %v867 = vunpack.c.l.b16 %v348
        %v868 = vunpack.c.l.b16 %v349
        %v869 = vunpack.c.l.b16 %v350
        %v870 = vunpack.c.l.b16 %v351
        %v871 = vunpack.c.l.b16 %v352
        %v872 = vunpack.c.l.b16 %v353
        %v873 = vunpack.c.l.b16 %v354
        %v874 = vunpack.c.l.b16 %v355
        %v875 = vunpack.c.l.b16 %v356
        %v876 = vunpack.c.l.b16 %v357
        %v877 = vunpack.c.l.b16 %v358
        %v878 = vunpack.c.l.b16 %v359
        %v879 = vunpack.c.l.b16 %v360
        %v880 = vunpack.c.l.b16 %v361
        %v881 = vunpack.c.l.b16 %v362
        %v882 = vunpack.c.l.b16 %v363
        %v883 = vunpack.c.l.b16 %v364
        %v884 = vunpack.c.l.b16 %v365
        %v885 = vunpack.c.l.b16 %v366
        %v886 = vunpack.c.l.b16 %v367
        %v887 = vunpack.c.l.b16 %v368
        %v888 = vunpack.c.l.b16 %v369
        %v889 = vunpack.c.l.b16 %v370
        %v890 = vunpack.c.l.b16 %v371
        %v891 = vunpack.c.l.b16 %v372
        %v892 = vunpack.c.l.b16 %v373
        %v893 = vunpack.c.l.b16 %v374
        %v894 = vunpack.c.l.b16 %v375
        %v895 = vunpack.c.l.b16 %v376
        %v896 = vunpack.c.l.b16 %v377
        %v897 = vunpack.c.l.b16 %v378
        %v898 = vunpack.c.l.b16 %v379
        %v899 = vunpack.c.l.b16 %v380
        %v900 = vunpack.c.l.b16 %v381
        %v901 = vunpack.c.l.b16 %v382
        %v902 = vunpack.c.l.b16 %v383
        %v903 = vunpack.c.l.b16 %v384
        %v904 = vunpack.c.l.b16 %v385
        %v905 = vunpack.c.l.b16 %v386
        %v906 = vunpack.c.l.b16 %v387
        %v907 = vunpack.c.l.b16 %v388
        %v908 = vunpack.c.l.b16 %v389
        %v909 = vunpack.c.l.b16 %v390
        %v910 = vunpack.c.l.b16 %v391
        %v911 = vunpack.c.l.b16 %v392
        %v912 = vunpack.c.l.b16 %v393
        %v913 = vunpack.c.l.b16 %v394
        %v914 = vunpack.c.l.b16 %v395
        %v915 = vunpack.c.l.b16 %v396
        %v916 = vunpack.c.l.b16 %v397
        %v917 = vunpack.c.l.b16 %v398
        %v918 = vunpack.c.l.b16 %v399
        %v919 = vunpack.c.l.b16 %v400
        %v920 = vunpack.c.l.b16 %v401
        %v921 = vunpack.c.l.b16 %v402
        %v922 = vunpack.c.l.b16 %v403
        %v923 = vunpack.c.l.b16 %v404
        %v924 = vunpack.c.l.b16 %v405
        %v925 = vunpack.c.l.b16 %v406
        %v926 = vunpack.c.l.b16 %v407
        %v927 = vunpack.c.l.b16 %v408
        %v928 = vunpack.c.l.b16 %v409
        %v929 = vunpack.c.l.b16 %v410
        %v930 = vunpack.c.l.b16 %v411
        %v931 = vunpack.c.l.b16 %v412
        %v932 = vunpack.c.l.b16 %v413
        %v933 = vunpack.c.l.b16 %v414
        %v934 = vunpack.c.l.b16 %v415
        %v935 = vunpack.c.l.b16 %v416
        %v936 = vunpack.c.l.b16 %v417
        %v937 = vunpack.c.l.b16 %v418
        %v938 = vunpack.c.l.b16 %v419
        %v939 = vunpack.c.l.b16 %v420
        %v940 = vunpack.c.l.b16 %v421
        %v941 = vunpack.c.l.b16 %v422
        %v942 = vunpack.c.l.b16 %v423
        %v943 = vunpack.c.l.b16 %v424
        %v944 = vunpack.c.l.b16 %v425
        %v945 = vunpack.c.l.b16 %v426
        %v946 = vunpack.c.l.b16 %v427
        %v947 = vunpack.c.l.b16 %v428
        %v948 = vunpack.c.l.b16 %v429
        %v949 = vunpack.c.l.b16 %v430
        %v950 = vunpack.c.l.b16 %v431
        %v951 = vunpack.c.l.b16 %v432
        %v952 = vunpack.c.l.b16 %v433
        %v953 = vunpack.c.l.b16 %v434
        %v954 = vunpack.c.l.b16 %v435
        %v955 = vunpack.c.l.b16 %v436
        %v956 = vunpack.c.l.b16 %v437
        %v957 = vunpack.c.l.b16 %v438
        %v958 = vunpack.c.l.b16 %v439
        %v959 = vunpack.c.l.b16 %v440
        %v960 = vunpack.c.l.b16 %v441
        %v961 = vunpack.c.l.b16 %v442
        %v962 = vunpack.c.l.b16 %v443
        %v963 = vunpack.c.l.b16 %v444
        %v964 = vunpack.c.l.b16 %v445
        %v965 = vunpack.c.l.b16 %v446
        %v966 = vunpack.c.l.b16 %v447
        %v967 = vunpack.c.l.b16 %v448
        %v968 = vunpack.c.l.b16 %v449
        %v969 = vunpack.c.l.b16 %v450
        %v970 = vunpack.c.l.b16 %v451
        %v971 = vunpack.c.l.b16 %v452
        %v972 = vunpack.c.l.b16 %v453
        %v973 = vunpack.c.l.b16 %v454
        %v974 = vunpack.c.l.b16 %v455
        %v975 = vunpack.c.l.b16 %v456
        %v976 = vunpack.c.l.b16 %v457
        %v977 = vunpack.c.l.b16 %v458
        %v978 = vunpack.c.l.b16 %v459
        %v979 = vunpack.c.l.b16 %v460
        %v980 = vunpack.c.l.b16 %v461
        %v981 = vunpack.c.l.b16 %v462
        %v982 = vunpack.c.l.b16 %v463
        %v983 = vunpack.c.l.b16 %v464
        %v984 = vunpack.c.l.b16 %v465
        %v985 = vunpack.c.l.b16 %v466
        %v986 = vunpack.c.l.b16 %v467
        %v987 = vunpack.c.l.b16 %v468
        %v988 = vunpack.c.l.b16 %v469
        %v989 = vunpack.c.l.b16 %v470
        %v990 = vunpack.c.l.b16 %v471
        %v991 = vunpack.c.l.b16 %v472
        %v992 = vunpack.c.l.b16 %v473
        %v993 = vunpack.c.l.b16 %v474
        %v994 = vunpack.c.l.b16 %v475
        %v995 = vunpack.c.l.b16 %v476
        %v996 = vunpack.c.l.b16 %v477
        %v997 = vunpack.c.l.b16 %v478
        %v998 = vunpack.c.l.b16 %v479
        %v999 = vunpack.c.l.b16 %v480
        %v1000 = vunpack.c.l.b16 %v481
        %v1001 = vunpack.c.l.b16 %v482
        %v1002 = vunpack.c.l.b16 %v483
        %v1003 = vunpack.c.l.b16 %v484
        %v1004 = vunpack.c.l.b16 %v485
        %v1005 = vunpack.c.l.b16 %v486
        %v1006 = vunpack.c.l.b16 %v487
        %v1007 = vunpack.c.l.b16 %v488
        %v1008 = vunpack.c.l.b16 %v489
        %v1009 = vunpack.c.l.b16 %v490
        %v1010 = vunpack.c.l.b16 %v491
        %v1011 = vunpack.c.l.b16 %v492
        %v1012 = vunpack.c.l.b16 %v493
        %v1013 = vunpack.c.l.b16 %v494
        %v1014 = vunpack.c.l.b16 %v495
        %v1015 = vunpack.c.l.b16 %v496
        %v1016 = vunpack.c.l.b16 %v497
        %v1017 = vunpack.c.l.b16 %v498
        %v1018 = vunpack.c.l.b16 %v499
        %v1019 = vunpack.c.l.b16 %v500
        %v1020 = vunpack.c.l.b16 %v501
        %v1021 = vunpack.c.l.b16 %v502
        %v1022 = vunpack.c.l.b16 %v503
        %v1023 = vunpack.c.l.b16 %v504
        %v1024 = vunpack.c.l.b16 %v505
        %v1025 = vunpack.c.l.b16 %v506
        %v1026 = vunpack.c.l.b16 %v507
        %v1027 = vunpack.c.l.b16 %v508
        %v1028 = vunpack.c.l.b16 %v509
        %v1029 = vunpack.c.l.b16 %v510
        %v1030 = vunpack.c.l.b16 %v511
        %v1031 = vunpack.c.l.b16 %v512
        %v1032 = vunpack.c.l.b16 %v513
        %v1033 = vunpack.c.l.b16 %v514
        %v1034 = vunpack.c.l.b16 %v515
        %v1035 = vunpack.c.l.b16 %v516
        %v1036 = vunpack.c.l.b16 %v517
        %v1037 = vunpack.c.l.b16 %v518
        %v1038 = vunpack.c.l.b16 %v519
        %v1039 = vunpack.c.l.b16 %v520
        %v1040 = vunpack.c.l.b16 %v521
        %v1041 = vunpack.c.l.b16 %v522
        %v1042 = vunpack.c.l.b16 %v523
        %v1043 = vunpack.c.l.b16 %v524
        %v1044 = vunpack.c.l.b16 %v525
        %v1045 = vunpack.c.l.b16 %v526
        %v1046 = vunpack.c.l.b16 %v527
        %v1047 = vunpack.c.l.b16 %v528
        %v1048 = vunpack.c.l.b16 %v529
        %v1049 = vunpack.c.l.b16 %v530
        %v1050 = vunpack.c.l.b16 %v531
        %v1051 = vunpack.c.l.b16 %v532
        %v1052 = vunpack.c.l.b16 %v533
        %v1053 = vunpack.c.l.b16 %v534
        %v1054 = vunpack.c.l.b16 %v535
        %v1055 = vunpack.c.l.b16 %v536
        %v1056 = vunpack.c.l.b16 %v537
        %v1057 = vunpack.c.l.b16 %v538
        %v1058 = vpack.c.b16 %v803, %v802
        %v1059 = vpack.c.b16 %v805, %v804
        %v1060 = vpack.c.b16 %v807, %v806
        %v1061 = vpack.c.b16 %v809, %v808
        %v1062 = vpack.c.b16 %v811, %v810
        %v1063 = vpack.c.b16 %v813, %v812
        %v1064 = vpack.c.b16 %v815, %v814
        %v1065 = vpack.c.b16 %v817, %v816
        %v1066 = vpack.c.b16 %v819, %v818
        %v1067 = vpack.c.b16 %v821, %v820
        %v1068 = vpack.c.b16 %v823, %v822
        %v1069 = vpack.c.b16 %v825, %v824
        %v1070 = vpack.c.b16 %v827, %v826
        %v1071 = vpack.c.b16 %v829, %v828
        %v1072 = vpack.c.b16 %v831, %v830
        %v1073 = vpack.c.b16 %v833, %v832
        %v1074 = vpack.c.b16 %v835, %v834
        %v1075 = vpack.c.b16 %v837, %v836
        %v1076 = vpack.c.b16 %v839, %v838
        %v1077 = vpack.c.b16 %v841, %v840
        %v1078 = vpack.c.b16 %v843, %v842
        %v1079 = vpack.c.b16 %v845, %v844
        %v1080 = vpack.c.b16 %v847, %v846
        %v1081 = vpack.c.b16 %v849, %v848
        %v1082 = vpack.c.b16 %v851, %v850
        %v1083 = vpack.c.b16 %v853, %v852
        %v1084 = vpack.c.b16 %v855, %v854
        %v1085 = vpack.c.b16 %v857, %v856
        %v1086 = vpack.c.b16 %v859, %v858
        %v1087 = vpack.c.b16 %v861, %v860
        %v1088 = vpack.c.b16 %v863, %v862
        %v1089 = vpack.c.b16 %v865, %v864
        %v1090 = vpack.c.b16 %v867, %v866
        %v1091 = vpack.c.b16 %v869, %v868
        %v1092 = vpack.c.b16 %v871, %v870
        %v1093 = vpack.c.b16 %v873, %v872
        %v1094 = vpack.c.b16 %v875, %v874
        %v1095 = vpack.c.b16 %v877, %v876
        %v1096 = vpack.c.b16 %v879, %v878
        %v1097 = vpack.c.b16 %v881, %v880
        %v1098 = vpack.c.b16 %v883, %v882
        %v1099 = vpack.c.b16 %v885, %v884
        %v1100 = vpack.c.b16 %v887, %v886
        %v1101 = vpack.c.b16 %v889, %v888
        %v1102 = vpack.c.b16 %v891, %v890
        %v1103 = vpack.c.b16 %v893, %v892
        %v1104 = vpack.c.b16 %v895, %v894
        %v1105 = vpack.c.b16 %v897, %v896
        %v1106 = vpack.c.b16 %v899, %v898
        %v1107 = vpack.c.b16 %v901, %v900
        %v1108 = vpack.c.b16 %v903, %v902
        %v1109 = vpack.c.b16 %v905, %v904
        %v1110 = vpack.c.b16 %v907, %v906
        %v1111 = vpack.c.b16 %v909, %v908
        %v1112 = vpack.c.b16 %v911, %v910
        %v1113 = vpack.c.b16 %v913, %v912
        %v1114 = vpack.c.b16 %v915, %v914
        %v1115 = vpack.c.b16 %v917, %v916
        %v1116 = vpack.c.b16 %v919, %v918
        %v1117 = vpack.c.b16 %v921, %v920
        %v1118 = vpack.c.b16 %v923, %v922
        %v1119 = vpack.c.b16 %v925, %v924
        %v1120 = vpack.c.b16 %v927, %v926
        %v1121 = vpack.c.b16 %v929, %v928
        %v1122 = vpack.c.b16 %v931, %v930
        %v1123 = vpack.c.b16 %v933, %v932
        %v1124 = vpack.c.b16 %v935, %v934
        %v1125 = vpack.c.b16 %v937, %v936
        %v1126 = vpack.c.b16 %v939, %v938
        %v1127 = vpack.c.b16 %v941, %v940
        %v1128 = vpack.c.b16 %v943, %v942
        %v1129 = vpack.c.b16 %v945, %v944
        %v1130 = vpack.c.b16 %v947, %v946
        %v1131 = vpack.c.b16 %v949, %v948
        %v1132 = vpack.c.b16 %v951, %v950
        %v1133 = vpack.c.b16 %v953, %v952
        %v1134 = vpack.c.b16 %v955, %v954
        %v1135 = vpack.c.b16 %v957, %v956
        %v1136 = vpack.c.b16 %v959, %v958
        %v1137 = vpack.c.b16 %v961, %v960
        %v1138 = vpack.c.b16 %v963, %v962
        %v1139 = vpack.c.b16 %v965, %v964
        %v1140 = vpack.c.b16 %v967, %v966
        %v1141 = vpack.c.b16 %v969, %v968
        %v1142 = vpack.c.b16 %v971, %v970
        %v1143 = vpack.c.b16 %v973, %v972
        %v1144 = vpack.c.b16 %v975, %v974
        %v1145 = vpack.c.b16 %v977, %v976
        %v1146 = vpack.c.b16 %v979, %v978
        %v1147 = vpack.c.b16 %v981, %v980
        %v1148 = vpack.c.b16 %v983, %v982
        %v1149 = vpack.c.b16 %v985, %v984
        %v1150 = vpack.c.b16 %v987, %v986
        %v1151 = vpack.c.b16 %v989, %v988
        %v1152 = vpack.c.b16 %v991, %v990
        %v1153 = vpack.c.b16 %v993, %v992
        %v1154 = vpack.c.b16 %v995, %v994
        %v1155 = vpack.c.b16 %v997, %v996
        %v1156 = vpack.c.b16 %v999, %v998
        %v1157 = vpack.c.b16 %v1001, %v1000
        %v1158 = vpack.c.b16 %v1003, %v1002
        %v1159 = vpack.c.b16 %v1005, %v1004
        %v1160 = vpack.c.b16 %v1007, %v1006
        %v1161 = vpack.c.b16 %v1009, %v1008
        %v1162 = vpack.c.b16 %v1011, %v1010
        %v1163 = vpack.c.b16 %v1013, %v1012
        %v1164 = vpack.c.b16 %v1015, %v1014
        %v1165 = vpack.c.b16 %v1017, %v1016
        %v1166 = vpack.c.b16 %v1019, %v1018
        %v1167 = vpack.c.b16 %v1021, %v1020
        %v1168 = vpack.c.b16 %v1023, %v1022
        %v1169 = vpack.c.b16 %v1025, %v1024
        %v1170 = vpack.c.b16 %v1027, %v1026
        %v1171 = vpack.c.b16 %v1029, %v1028
        %v1172 = vpack.c.b16 %v1031, %v1030
        %v1173 = vpack.c.b16 %v1033, %v1032
        %v1174 = vpack.c.b16 %v1035, %v1034
        %v1175 = vpack.c.b16 %v1037, %v1036
        %v1176 = vpack.c.b16 %v1039, %v1038
        %v1177 = vpack.c.b16 %v1041, %v1040
        %v1178 = vpack.c.b16 %v1043, %v1042
        %v1179 = vpack.c.b16 %v1045, %v1044
        %v1180 = vpack.c.b16 %v1047, %v1046
        %v1181 = vpack.c.b16 %v1049, %v1048
        %v1182 = vpack.c.b16 %v1051, %v1050
        %v1183 = vpack.c.b16 %v1053, %v1052
        %v1184 = vpack.c.b16 %v1055, %v1054
        %v1185 = vpack.c.b16 %v1057, %v1056
        %1314 = vmatprep.subr.bf16.mxu0 0
        %1315 = vmatpush1.bf16.msra.mxu0 %v1058
        %1316 = vmatprep.subr.bf16.mxu0 0
        %1317 = vmatpush1.bf16.msra.mxu0 %v1059
        %1318 = vmatprep.subr.bf16.mxu0 0
        %1319 = vmatpush1.bf16.msra.mxu0 %v1060
        %1320 = vmatprep.subr.bf16.mxu0 0
        %1321 = vmatpush1.bf16.msra.mxu0 %v1061
        %1322 = vmatprep.subr.bf16.mxu0 0
        %1323 = vmatpush1.bf16.msra.mxu0 %v1062
        %1324 = vmatprep.subr.bf16.mxu0 0
        %1325 = vmatpush1.bf16.msra.mxu0 %v1063
        %1326 = vmatprep.subr.bf16.mxu0 0
        %1327 = vmatpush1.bf16.msra.mxu0 %v1064
        %1328 = vmatprep.subr.bf16.mxu0 0
        %1329 = vmatpush1.bf16.msra.mxu0 %v1065
        %1330 = vmatprep.subr.bf16.mxu0 0
        %1331 = vmatpush1.bf16.msra.mxu0 %v1066
        %1332 = vmatprep.subr.bf16.mxu0 0
        %1333 = vmatpush1.bf16.msra.mxu0 %v1067
        %1334 = vmatprep.subr.bf16.mxu0 0
        %1335 = vmatpush1.bf16.msra.mxu0 %v1068
        %1336 = vmatprep.subr.bf16.mxu0 0
        %1337 = vmatpush1.bf16.msra.mxu0 %v1069
        %1338 = vmatprep.subr.bf16.mxu0 0
        %1339 = vmatpush1.bf16.msra.mxu0 %v1070
        %1340 = vmatprep.subr.bf16.mxu0 0
        %1341 = vmatpush1.bf16.msra.mxu0 %v1071
        %1342 = vmatprep.subr.bf16.mxu0 0
        %1343 = vmatpush1.bf16.msra.mxu0 %v1072
        %1344 = vmatprep.subr.bf16.mxu0 0
        %1345 = vmatpush1.bf16.msra.mxu0 %v1073
        %1346 = vmatprep.mubr.bf16.mxu0 %v268
        %1347 = vmatmul.mubr.bf16.gmra.mrb[0].mxu0 %v267
        %v1348 = vpop.f32.mrb[0].mxu0
        %v1349 = vadd.f32 %v544, %v1348
        %v1350 = vpop.f32.mrb[0].mxu0
        %v1351 = vpop.f32.mrb[0].mxu0
        %v1352 = vadd.f32 %v544, %v1351
        %v1353 = vpop.f32.mrb[0].mxu0
        %1354 = vdwg.mxu0
        %1355 = vmatprep.subr.bf16.mxu0 0
        %1356 = vmatpush1.bf16.msra.mxu0 %v1074
        %1357 = vmatprep.subr.bf16.mxu0 0
        %1358 = vmatpush1.bf16.msra.mxu0 %v1075
        %1359 = vmatprep.subr.bf16.mxu0 0
        %1360 = vmatpush1.bf16.msra.mxu0 %v1076
        %1361 = vmatprep.subr.bf16.mxu0 0
        %1362 = vmatpush1.bf16.msra.mxu0 %v1077
        %1363 = vmatprep.subr.bf16.mxu0 0
        %1364 = vmatpush1.bf16.msra.mxu0 %v1078
        %1365 = vmatprep.subr.bf16.mxu0 0
        %1366 = vmatpush1.bf16.msra.mxu0 %v1079
        %1367 = vmatprep.subr.bf16.mxu0 0
        %1368 = vmatpush1.bf16.msra.mxu0 %v1080
        %1369 = vmatprep.subr.bf16.mxu0 0
        %1370 = vmatpush1.bf16.msra.mxu0 %v1081
        %1371 = vmatprep.subr.bf16.mxu0 0
        %1372 = vmatpush1.bf16.msra.mxu0 %v1082
        %1373 = vmatprep.subr.bf16.mxu0 0
        %1374 = vmatpush1.bf16.msra.mxu0 %v1083
        %1375 = vmatprep.subr.bf16.mxu0 0
        %1376 = vmatpush1.bf16.msra.mxu0 %v1084
        %1377 = vmatprep.subr.bf16.mxu0 0
        %1378 = vmatpush1.bf16.msra.mxu0 %v1085
        %1379 = vmatprep.subr.bf16.mxu0 0
        %1380 = vmatpush1.bf16.msra.mxu0 %v1086
        %1381 = vmatprep.subr.bf16.mxu0 0
        %1382 = vmatpush1.bf16.msra.mxu0 %v1087
        %1383 = vmatprep.subr.bf16.mxu0 0
        %1384 = vmatpush1.bf16.msra.mxu0 %v1088
        %1385 = vmatprep.subr.bf16.mxu0 0
        %1386 = vmatpush1.bf16.msra.mxu0 %v1089
        %1387 = vmatprep.mubr.bf16.mxu0 %v270
        %1388 = vmatmul.mubr.bf16.gmra.mrb[0].mxu0 %v269
        %v1389 = vpop.f32.mrb[0].mxu0
        %v1390 = vadd.f32 %v1349, %v1389
        %v1391 = vpop.f32.mrb[0].mxu0
        %v1392 = vpop.f32.mrb[0].mxu0
        %v1393 = vadd.f32 %v1352, %v1392
        %v1394 = vpop.f32.mrb[0].mxu0
        %1395 = vdwg.mxu0
        %1396 = vmatprep.subr.bf16.mxu0 0
        %1397 = vmatpush1.bf16.msra.mxu0 %v1090
        %1398 = vmatprep.subr.bf16.mxu0 0
        %1399 = vmatpush1.bf16.msra.mxu0 %v1091
        %1400 = vmatprep.subr.bf16.mxu0 0
        %1401 = vmatpush1.bf16.msra.mxu0 %v1092
        %1402 = vmatprep.subr.bf16.mxu0 0
        %1403 = vmatpush1.bf16.msra.mxu0 %v1093
        %1404 = vmatprep.subr.bf16.mxu0 0
        %1405 = vmatpush1.bf16.msra.mxu0 %v1094
        %1406 = vmatprep.subr.bf16.mxu0 0
        %1407 = vmatpush1.bf16.msra.mxu0 %v1095
        %1408 = vmatprep.subr.bf16.mxu0 0
        %1409 = vmatpush1.bf16.msra.mxu0 %v1096
        %1410 = vmatprep.subr.bf16.mxu0 0
        %1411 = vmatpush1.bf16.msra.mxu0 %v1097
        %1412 = vmatprep.subr.bf16.mxu0 0
        %1413 = vmatpush1.bf16.msra.mxu0 %v1098
        %1414 = vmatprep.subr.bf16.mxu0 0
        %1415 = vmatpush1.bf16.msra.mxu0 %v1099
        %1416 = vmatprep.subr.bf16.mxu0 0
        %1417 = vmatpush1.bf16.msra.mxu0 %v1100
        %1418 = vmatprep.subr.bf16.mxu0 0
        %1419 = vmatpush1.bf16.msra.mxu0 %v1101
        %1420 = vmatprep.subr.bf16.mxu0 0
        %1421 = vmatpush1.bf16.msra.mxu0 %v1102
        %1422 = vmatprep.subr.bf16.mxu0 0
        %1423 = vmatpush1.bf16.msra.mxu0 %v1103
        %1424 = vmatprep.subr.bf16.mxu0 0
        %1425 = vmatpush1.bf16.msra.mxu0 %v1104
        %1426 = vmatprep.subr.bf16.mxu0 0
        %1427 = vmatpush1.bf16.msra.mxu0 %v1105
        %1428 = vmatprep.mubr.bf16.mxu0 %v272
        %1429 = vmatmul.mubr.bf16.gmra.mrb[0].mxu0 %v271
        %v1430 = vpop.f32.mrb[0].mxu0
        %v1431 = vadd.f32 %v1390, %v1430
        %v1432 = vpop.f32.mrb[0].mxu0
        %v1433 = vpop.f32.mrb[0].mxu0
        %v1434 = vadd.f32 %v1393, %v1433
        %v1435 = vpop.f32.mrb[0].mxu0
        %1436 = vdwg.mxu0
        %1437 = vmatprep.subr.bf16.mxu0 0
        %1438 = vmatpush1.bf16.msra.mxu0 %v1106
        %1439 = vmatprep.subr.bf16.mxu0 0
        %1440 = vmatpush1.bf16.msra.mxu0 %v1107
        %1441 = vmatprep.subr.bf16.mxu0 0
        %1442 = vmatpush1.bf16.msra.mxu0 %v1108
        %1443 = vmatprep.subr.bf16.mxu0 0
        %1444 = vmatpush1.bf16.msra.mxu0 %v1109
        %1445 = vmatprep.subr.bf16.mxu0 0
        %1446 = vmatpush1.bf16.msra.mxu0 %v1110
        %1447 = vmatprep.subr.bf16.mxu0 0
        %1448 = vmatpush1.bf16.msra.mxu0 %v1111
        %1449 = vmatprep.subr.bf16.mxu0 0
        %1450 = vmatpush1.bf16.msra.mxu0 %v1112
        %1451 = vmatprep.subr.bf16.mxu0 0
        %1452 = vmatpush1.bf16.msra.mxu0 %v1113
        %1453 = vmatprep.subr.bf16.mxu0 0
        %1454 = vmatpush1.bf16.msra.mxu0 %v1114
        %1455 = vmatprep.subr.bf16.mxu0 0
        %1456 = vmatpush1.bf16.msra.mxu0 %v1115
        %1457 = vmatprep.subr.bf16.mxu0 0
        %1458 = vmatpush1.bf16.msra.mxu0 %v1116
        %1459 = vmatprep.subr.bf16.mxu0 0
        %1460 = vmatpush1.bf16.msra.mxu0 %v1117
        %1461 = vmatprep.subr.bf16.mxu0 0
        %1462 = vmatpush1.bf16.msra.mxu0 %v1118
        %1463 = vmatprep.subr.bf16.mxu0 0
        %1464 = vmatpush1.bf16.msra.mxu0 %v1119
        %1465 = vmatprep.subr.bf16.mxu0 0
        %1466 = vmatpush1.bf16.msra.mxu0 %v1120
        %1467 = vmatprep.subr.bf16.mxu0 0
        %1468 = vmatpush1.bf16.msra.mxu0 %v1121
        %1469 = vmatprep.mubr.bf16.mxu0 %v274
        %1470 = vmatmul.mubr.bf16.gmra.mrb[0].mxu0 %v273
        %v1471 = vpop.f32.mrb[0].mxu0
        %v1472 = vadd.f32 %v1431, %v1471
        %v1473 = vpop.f32.mrb[0].mxu0
        %v1474 = vpop.f32.mrb[0].mxu0
        %v1475 = vadd.f32 %v1434, %v1474
        %v1476 = vpop.f32.mrb[0].mxu0
        %1477 = vdwg.mxu0
        %1478 = vmatprep.subr.bf16.mxu0 0
        %1479 = vmatpush1.bf16.msra.mxu0 %v1122
        %1480 = vmatprep.subr.bf16.mxu0 0
        %1481 = vmatpush1.bf16.msra.mxu0 %v1123
        %1482 = vmatprep.subr.bf16.mxu0 0
        %1483 = vmatpush1.bf16.msra.mxu0 %v1124
        %1484 = vmatprep.subr.bf16.mxu0 0
        %1485 = vmatpush1.bf16.msra.mxu0 %v1125
        %1486 = vmatprep.subr.bf16.mxu0 0
        %1487 = vmatpush1.bf16.msra.mxu0 %v1126
        %1488 = vmatprep.subr.bf16.mxu0 0
        %1489 = vmatpush1.bf16.msra.mxu0 %v1127
        %1490 = vmatprep.subr.bf16.mxu0 0
        %1491 = vmatpush1.bf16.msra.mxu0 %v1128
        %1492 = vmatprep.subr.bf16.mxu0 0
        %1493 = vmatpush1.bf16.msra.mxu0 %v1129
        %1494 = vmatprep.subr.bf16.mxu0 0
        %1495 = vmatpush1.bf16.msra.mxu0 %v1130
        %1496 = vmatprep.subr.bf16.mxu0 0
        %1497 = vmatpush1.bf16.msra.mxu0 %v1131
        %1498 = vmatprep.subr.bf16.mxu0 0
        %1499 = vmatpush1.bf16.msra.mxu0 %v1132
        %1500 = vmatprep.subr.bf16.mxu0 0
        %1501 = vmatpush1.bf16.msra.mxu0 %v1133
        %1502 = vmatprep.subr.bf16.mxu0 0
        %1503 = vmatpush1.bf16.msra.mxu0 %v1134
        %1504 = vmatprep.subr.bf16.mxu0 0
        %1505 = vmatpush1.bf16.msra.mxu0 %v1135
        %1506 = vmatprep.subr.bf16.mxu0 0
        %1507 = vmatpush1.bf16.msra.mxu0 %v1136
        %1508 = vmatprep.subr.bf16.mxu0 0
        %1509 = vmatpush1.bf16.msra.mxu0 %v1137
        %1510 = vmatprep.mubr.bf16.mxu0 %v276
        %1511 = vmatmul.mubr.bf16.gmra.mrb[0].mxu0 %v275
        %v1512 = vpop.f32.mrb[0].mxu0
        %v1513 = vadd.f32 %v1472, %v1512
        %v1514 = vpop.f32.mrb[0].mxu0
        %v1515 = vpop.f32.mrb[0].mxu0
        %v1516 = vadd.f32 %v1475, %v1515
        %v1517 = vpop.f32.mrb[0].mxu0
        %1518 = vdwg.mxu0
        %1519 = vmatprep.subr.bf16.mxu0 0
        %1520 = vmatpush1.bf16.msra.mxu0 %v1138
        %1521 = vmatprep.subr.bf16.mxu0 0
        %1522 = vmatpush1.bf16.msra.mxu0 %v1139
        %1523 = vmatprep.subr.bf16.mxu0 0
        %1524 = vmatpush1.bf16.msra.mxu0 %v1140
        %1525 = vmatprep.subr.bf16.mxu0 0
        %1526 = vmatpush1.bf16.msra.mxu0 %v1141
        %1527 = vmatprep.subr.bf16.mxu0 0
        %1528 = vmatpush1.bf16.msra.mxu0 %v1142
        %1529 = vmatprep.subr.bf16.mxu0 0
        %1530 = vmatpush1.bf16.msra.mxu0 %v1143
        %1531 = vmatprep.subr.bf16.mxu0 0
        %1532 = vmatpush1.bf16.msra.mxu0 %v1144
        %1533 = vmatprep.subr.bf16.mxu0 0
        %1534 = vmatpush1.bf16.msra.mxu0 %v1145
        %1535 = vmatprep.subr.bf16.mxu0 0
        %1536 = vmatpush1.bf16.msra.mxu0 %v1146
        %1537 = vmatprep.subr.bf16.mxu0 0
        %1538 = vmatpush1.bf16.msra.mxu0 %v1147
        %1539 = vmatprep.subr.bf16.mxu0 0
        %1540 = vmatpush1.bf16.msra.mxu0 %v1148
        %1541 = vmatprep.subr.bf16.mxu0 0
        %1542 = vmatpush1.bf16.msra.mxu0 %v1149
        %1543 = vmatprep.subr.bf16.mxu0 0
        %1544 = vmatpush1.bf16.msra.mxu0 %v1150
        %1545 = vmatprep.subr.bf16.mxu0 0
        %1546 = vmatpush1.bf16.msra.mxu0 %v1151
        %1547 = vmatprep.subr.bf16.mxu0 0
        %1548 = vmatpush1.bf16.msra.mxu0 %v1152
        %1549 = vmatprep.subr.bf16.mxu0 0
        %1550 = vmatpush1.bf16.msra.mxu0 %v1153
        %1551 = vmatprep.mubr.bf16.mxu0 %v278
        %1552 = vmatmul.mubr.bf16.gmra.mrb[0].mxu0 %v277
        %v1553 = vpop.f32.mrb[0].mxu0
        %v1554 = vadd.f32 %v1513, %v1553
        %v1555 = vpop.f32.mrb[0].mxu0
        %v1556 = vpop.f32.mrb[0].mxu0
        %v1557 = vadd.f32 %v1516, %v1556
        %v1558 = vpop.f32.mrb[0].mxu0
        %1559 = vdwg.mxu0
        %1560 = vmatprep.subr.bf16.mxu0 0
        %1561 = vmatpush1.bf16.msra.mxu0 %v1154
        %1562 = vmatprep.subr.bf16.mxu0 0
        %1563 = vmatpush1.bf16.msra.mxu0 %v1155
        %1564 = vmatprep.subr.bf16.mxu0 0
        %1565 = vmatpush1.bf16.msra.mxu0 %v1156
        %1566 = vmatprep.subr.bf16.mxu0 0
        %1567 = vmatpush1.bf16.msra.mxu0 %v1157
        %1568 = vmatprep.subr.bf16.mxu0 0
        %1569 = vmatpush1.bf16.msra.mxu0 %v1158
        %1570 = vmatprep.subr.bf16.mxu0 0
        %1571 = vmatpush1.bf16.msra.mxu0 %v1159
        %1572 = vmatprep.subr.bf16.mxu0 0
        %1573 = vmatpush1.bf16.msra.mxu0 %v1160
        %1574 = vmatprep.subr.bf16.mxu0 0
        %1575 = vmatpush1.bf16.msra.mxu0 %v1161
        %1576 = vmatprep.subr.bf16.mxu0 0
        %1577 = vmatpush1.bf16.msra.mxu0 %v1162
        %1578 = vmatprep.subr.bf16.mxu0 0
        %1579 = vmatpush1.bf16.msra.mxu0 %v1163
        %1580 = vmatprep.subr.bf16.mxu0 0
        %1581 = vmatpush1.bf16.msra.mxu0 %v1164
        %1582 = vmatprep.subr.bf16.mxu0 0
        %1583 = vmatpush1.bf16.msra.mxu0 %v1165
        %1584 = vmatprep.subr.bf16.mxu0 0
        %1585 = vmatpush1.bf16.msra.mxu0 %v1166
        %1586 = vmatprep.subr.bf16.mxu0 0
        %1587 = vmatpush1.bf16.msra.mxu0 %v1167
        %1588 = vmatprep.subr.bf16.mxu0 0
        %1589 = vmatpush1.bf16.msra.mxu0 %v1168
        %1590 = vmatprep.subr.bf16.mxu0 0
        %1591 = vmatpush1.bf16.msra.mxu0 %v1169
        %1592 = vmatprep.mubr.bf16.mxu0 %v280
        %1593 = vmatmul.mubr.bf16.gmra.mrb[0].mxu0 %v279
        %v1594 = vpop.f32.mrb[0].mxu0
        %v1595 = vadd.f32 %v1554, %v1594
        %v1596 = vpop.f32.mrb[0].mxu0
        %v1597 = vpop.f32.mrb[0].mxu0
        %v1598 = vadd.f32 %v1557, %v1597
        %v1599 = vpop.f32.mrb[0].mxu0
        %1600 = vdwg.mxu0
        %1601 = vmatprep.subr.bf16.mxu0 0
        %1602 = vmatpush1.bf16.msra.mxu0 %v1170
        %1603 = vmatprep.subr.bf16.mxu0 0
        %1604 = vmatpush1.bf16.msra.mxu0 %v1171
        %1605 = vmatprep.subr.bf16.mxu0 0
        %1606 = vmatpush1.bf16.msra.mxu0 %v1172
        %1607 = vmatprep.subr.bf16.mxu0 0
        %1608 = vmatpush1.bf16.msra.mxu0 %v1173
        %1609 = vmatprep.subr.bf16.mxu0 0
        %1610 = vmatpush1.bf16.msra.mxu0 %v1174
        %1611 = vmatprep.subr.bf16.mxu0 0
        %1612 = vmatpush1.bf16.msra.mxu0 %v1175
        %1613 = vmatprep.subr.bf16.mxu0 0
        %1614 = vmatpush1.bf16.msra.mxu0 %v1176
        %1615 = vmatprep.subr.bf16.mxu0 0
        %1616 = vmatpush1.bf16.msra.mxu0 %v1177
        %1617 = vmatprep.subr.bf16.mxu0 0
        %1618 = vmatpush1.bf16.msra.mxu0 %v1178
        %1619 = vmatprep.subr.bf16.mxu0 0
        %1620 = vmatpush1.bf16.msra.mxu0 %v1179
        %1621 = vmatprep.subr.bf16.mxu0 0
        %1622 = vmatpush1.bf16.msra.mxu0 %v1180
        %1623 = vmatprep.subr.bf16.mxu0 0
        %1624 = vmatpush1.bf16.msra.mxu0 %v1181
        %1625 = vmatprep.subr.bf16.mxu0 0
        %1626 = vmatpush1.bf16.msra.mxu0 %v1182
        %1627 = vmatprep.subr.bf16.mxu0 0
        %1628 = vmatpush1.bf16.msra.mxu0 %v1183
        %1629 = vmatprep.subr.bf16.mxu0 0
        %1630 = vmatpush1.bf16.msra.mxu0 %v1184
        %1631 = vmatprep.subr.bf16.mxu0 0
        %1632 = vmatpush1.bf16.msra.mxu0 %v1185
        %1633 = vmatprep.mubr.bf16.mxu0 %v282
        %1634 = vmatmul.mubr.bf16.gmra.mrb[0].mxu0 %v281
        %v1635 = vpop.f32.mrb[0].mxu0
        %v1636 = vadd.f32 %v1595, %v1635
        %v1637 = vpop.f32.mrb[0].mxu0
        %v1638 = vpop.f32.mrb[0].mxu0
        %v1639 = vadd.f32 %v1598, %v1638
        %v1640 = vpop.f32.mrb[0].mxu0
        %1641 = vdwg.mxu0
        %1642 = vst [vmem:[%s233] sm:$0xff] %v1636
        %1643 = vst [vmem:[%s233 + $0x8] sm:$0xff] %v1639
        %s1644 = sand.u32 %s102, 1
        %s1645 = scalar_lea.sflag [#allocation4], %s1644
        %s1646 = sand.u32 %s102, 1
        %s1647 = smul.addr %s1646, 16
        %s1648 = scalar_lea.vmem [#allocation8], %s1647
        // Predicated region
        $region45: #{tpu_custom_call.1} parent=31 // pred_check
          %p1649 = pneg %p112
        $region46: #{tpu_custom_call.1} parent=31 // pred_check_branch
          %1651 = sbr.rel (%p1649) target = $region48
        $region47: #{tpu_custom_call.1} parent=31 // pred_region
          %s1653 = ssub.s32 256, 256
          %1654 = vsyncadd %s1645, %s1653
          %s1655 = smul.addr %s21, 128
          %s1656 = scalar_lea.hbm %s3, %s1655
          %s1657 = sshll.u32 %s1648, 4
          %s1658 = int_to_ptr.vmem [resolvable:$true] %s1657
          %1663 = dma.vmem_to_hbm [thread:$0]  %s1658, 256, %s1656, %s1645, 128, 384, 8
        $region48: #{tpu_custom_call.1} parent=31 // pred_fallthru
          _
      $region32: #{tpu_custom_call.1} parent=5 // pred_fallthru
        _
      %p1664 = scmp.le.s32.totalorder 2, %s16
      // Predicated region
      $region49: #{tpu_custom_call.1} parent=5 // pred_check
        %p1665 = pneg %p1664
      $region50: #{tpu_custom_call.1} parent=5 // pred_check_branch
        %1667 = sbr.rel (%p1665) target = $region52
      $region51: #{tpu_custom_call.1} parent=5 // pred_region
        %s1668 = ssub.s32 %s16, 2
        // Predicated region
        $region53: #{tpu_custom_call.1} parent=51 // pred_check
          %p1669 = pneg %p118
        $region54: #{tpu_custom_call.1} parent=51 // pred_check_branch
          %1671 = sbr.rel (%p1669) target = $region56
        $region55: #{tpu_custom_call.1} parent=51 // pred_region
          %s1672 = sand.u32 %s103, 1
          %s1673 = scalar_lea.sflag [#allocation4], %s1672
          %s1674 = sand.u32 %s103, 1
          %s1675 = smul.addr %s1674, 16
          %s1676 = scalar_lea.vmem [#allocation8], %s1675
          %1677 = dma.done %s1673, 256
        $region56: #{tpu_custom_call.1} parent=51 // pred_fallthru
          _
      $region52: #{tpu_custom_call.1} parent=5 // pred_fallthru
        _
    $region6: #{tpu_custom_call.1} parent=1 // loop_footer
      %s20 = sadd.s32 1, %s16
    $region7: #{tpu_custom_call.1} parent=1 // loop_footer_branch
      %15 = sbr.rel target = $region3
    $region8: #{tpu_custom_call.1} parent=1 // loop_exit
      _
    %1678 = vsyncpa [#allocation3], 1
    %s1679 = scalar_lea.sflag [#allocation3], 1
    %1680 = vsyncpa %s1679, 1
    %1681 = vsyncpa [#allocation6], 1
    %s1682 = scalar_lea.sflag [#allocation6], 1
    %1683 = vsyncpa %s1682, 1
    %1684 = vsyncpa [#allocation4], 1
    %s1685 = scalar_lea.sflag [#allocation4], 1
    %1686 = vsyncpa %s1685, 1

</llo_original>
